<compile_context>
chip_gen: v5e
topology: v5e:2x2
jax: 0.10.0
libtpu: 0.0.40
codegen_flags: <defaults>
</compile_context>

<pallas_src>
import functools

import jax
import jax.numpy as jnp
from jax.experimental import pallas as pl
from jax.experimental.pallas import tpu as pltpu


def _round_up(x, m):
    return ((x + m - 1) // m) * m


def mlp_actor_kernel(x_ref, w1_ref, b1_ref, w2_ref, b2_ref, w3_ref, b3_ref,
                     out_ref, *, act_limit):
    """Fused 3-layer MLP: (Linear+ReLU) x2 -> Linear -> tanh -> * act_limit."""
    cd = w1_ref.dtype  # MXU operand dtype (bf16 default, f32 debug path)

    # Layer 1: MXU matmul (f32 accumulate) + f32 bias/ReLU epilogue on the VPU.
    h = jnp.dot(x_ref[...], w1_ref[...], preferred_element_type=jnp.float32)
    h = jnp.maximum(h + b1_ref[...], 0.0)

    # Layer 2: Linear + ReLU.
    h = jnp.dot(h.astype(cd), w2_ref[...], preferred_element_type=jnp.float32)
    h = jnp.maximum(h + b2_ref[...], 0.0)

    # Output layer: narrow-N matmul (act_dim lanes), tanh on the EUP, scale,
    # narrow masked store (out_ref last dim == act_dim, no 128-lane padding).
    o = jnp.dot(h.astype(cd), w3_ref[...], preferred_element_type=jnp.float32)
    o = jnp.tanh(o + b3_ref[...])
    out_ref[...] = (act_limit * o).astype(out_ref.dtype)


def prepare_actor_params(params, *, compute_dtype=jnp.bfloat16):
    """Pad + cast parameters ONCE (not per forward call).

    Hidden dims -> multiples of 128 lanes; obs_dim / act_dim untouched.
    Weights cast to compute_dtype; biases stay f32 (epilogue runs in f32).
    """
    h1 = params["W1"].shape[1]
    h2 = params["W2"].shape[1]
    act_dim = params["W3"].shape[1]
    h1p = _round_up(h1, 128)
    h2p = _round_up(h2, 128)
    f32 = jnp.float32
    return {
        "W1": jnp.pad(params["W1"], ((0, 0), (0, h1p - h1))).astype(compute_dtype),
        "b1": jnp.pad(params["b1"], (0, h1p - h1)).reshape(1, h1p).astype(f32),
        "W2": jnp.pad(params["W2"], ((0, h1p - h1), (0, h2p - h2))).astype(compute_dtype),
        "b2": jnp.pad(params["b2"], (0, h2p - h2)).reshape(1, h2p).astype(f32),
        "W3": jnp.pad(params["W3"], ((0, h2p - h2), (0, 0))).astype(compute_dtype),
        "b3": params["b3"].reshape(1, act_dim).astype(f32),
    }


def mlp_actor_forward(obs, prep, act_limit, *, tile_b=512):
    """obs: (B, obs_dim) f32. prep: output of prepare_actor_params."""
    B, obs_dim = obs.shape
    compute_dtype = prep["W1"].dtype
    h1p = prep["W1"].shape[1]
    h2p = prep["W2"].shape[1]
    act_dim = prep["W3"].shape[1]

    # Batch tiling at 128-row granularity; big default tile (~85% of HBM
    # roofline per tile sweeps). If there is enough work (>= 256 rows), keep
    # at least 2 grid steps so both v7x TensorCores get a share.
    b_aligned = _round_up(max(B, 1), 128)
    tile = _round_up(min(tile_b, b_aligned), 128)
    if b_aligned >= 256 and b_aligned < 2 * tile:
        tile = _round_up(b_aligned // 2, 128)
    bp = _round_up(b_aligned, tile)
    grid = (bp // tile,)

    obs_p = obs if bp == B else jnp.pad(obs, ((0, bp - B), (0, 0)))
    obs_p = obs_p.astype(compute_dtype)

    const2d = lambda i: (0, 0)  # weights/biases: VMEM-resident, DMA'd once
    in_specs = [
        pl.BlockSpec((tile, obs_dim), lambda i: (i, 0)),   # obs: batch-tiled
        pl.BlockSpec((obs_dim, h1p), const2d),
        pl.BlockSpec((1, h1p), const2d),
        pl.BlockSpec((h1p, h2p), const2d),
        pl.BlockSpec((1, h2p), const2d),
        pl.BlockSpec((h2p, act_dim), const2d),
        pl.BlockSpec((1, act_dim), const2d),
    ]
    # Narrow output block: full last dim == act_dim (masked store), no padded
    # writeback and no post-call lane slice.
    out_spec = pl.BlockSpec((tile, act_dim), lambda i: (i, 0))

    itemsize = jnp.dtype(compute_dtype).itemsize
    flops = 2 * bp * (obs_dim * h1p + h1p * h2p + h2p * act_dim)
    bytes_accessed = (bp * obs_dim * itemsize + bp * act_dim * 4
                      + (obs_dim * h1p + h1p * h2p + h2p * act_dim) * itemsize
                      + (h1p + h2p + act_dim) * 4)
    cost = pl.CostEstimate(flops=int(flops), transcendentals=int(bp * act_dim),
                           bytes_accessed=int(bytes_accessed))

    kernel = functools.partial(mlp_actor_kernel, act_limit=float(act_limit))

    out = pl.pallas_call(
        kernel,
        out_shape=jax.ShapeDtypeStruct((bp, act_dim), jnp.float32),
        grid=grid,
        in_specs=in_specs,
        out_specs=out_spec,
        compiler_params=pltpu.CompilerParams(
            dimension_semantics=("parallel",)),
        cost_estimate=cost,
    )(obs_p, prep["W1"], prep["b1"], prep["W2"], prep["b2"],
      prep["W3"], prep["b3"])

    return out if bp == B else out[:B]


def init_params(key, obs_dim, hidden_sizes, act_dim):
    """Deterministic init mimicking PyTorch Linear default (U[-1/sqrt(in), 1/sqrt(in)])."""
    sizes = [obs_dim] + list(hidden_sizes) + [act_dim]
    params = {}
    for j in range(len(sizes) - 1):
        fan_in, fan_out = sizes[j], sizes[j + 1]
        key, kw, kb = jax.random.split(key, 3)
        bound = 1.0 / jnp.sqrt(fan_in)
        params[f"W{j+1}"] = jax.random.uniform(
            kw, (fan_in, fan_out), jnp.float32, minval=-bound, maxval=bound)
        params[f"b{j+1}"] = jax.random.uniform(
            kb, (fan_out,), jnp.float32, minval=-bound, maxval=bound)
    return params


def reference_forward(obs, params, act_limit):
    h = jnp.maximum(obs @ params["W1"] + params["b1"], 0.0)
    h = jnp.maximum(h @ params["W2"] + params["b2"], 0.0)
    return act_limit * jnp.tanh(h @ params["W3"] + params["b3"])


if __name__ == "__main__":
    key = jax.random.PRNGKey(0)
    batch = 2
    obs_dim = 16
    hidden_sizes = (32, 32)
    act_dim = 8
    act_limit = 2.0

    key, k_obs = jax.random.split(key)
    obs = jax.random.normal(k_obs, (batch, obs_dim), jnp.float32)
    params = init_params(key, obs_dim, hidden_sizes, act_dim)
    ref = reference_forward(obs, params, act_limit)

    # Exact f32 debug path (weights prepared once, reused across calls).
    prep_f32 = prepare_actor_params(params, compute_dtype=jnp.float32)
    out_f32 = jax.block_until_ready(mlp_actor_forward(obs, prep_f32, act_limit))
    assert out_f32.shape == (batch, act_dim)
    assert jnp.allclose(out_f32, ref, atol=1e-5, rtol=1e-5), \
        "f32 kernel mismatch vs pure-JAX reference"

    # Default bf16 MXU path (bf16 obs/weights, f32 accumulation + f32 epilogue),
    # jitted as it would be in a training/inference loop.
    prep_bf16 = prepare_actor_params(params)  # compute_dtype=bfloat16
    fwd = jax.jit(functools.partial(mlp_actor_forward, act_limit=act_limit))
    out_bf16 = jax.block_until_ready(fwd(obs, prep_bf16))
    assert out_bf16.shape == (batch, act_dim)
    assert jnp.allclose(out_bf16, ref, atol=1e-1, rtol=1e-1), \
        "bf16 kernel mismatch vs pure-JAX reference"

    print("KERNEL_OK")
</pallas_src>

<mosaic_0001>
module attributes {stable_mosaic.version = 11 : i64} {
  func.func @mlp_actor_kernel(%arg0: i32, %arg1: memref<128x16xf32, #tpu.memory_space<vmem>>, %arg2: memref<16x128xf32, #tpu.memory_space<vmem>>, %arg3: memref<1x128xf32, #tpu.memory_space<vmem>>, %arg4: memref<128x128xf32, #tpu.memory_space<vmem>>, %arg5: memref<1x128xf32, #tpu.memory_space<vmem>>, %arg6: memref<128x8xf32, #tpu.memory_space<vmem>>, %arg7: memref<1x8xf32, #tpu.memory_space<vmem>>, %arg8: memref<128x8xf32, #tpu.memory_space<vmem>>) attributes {dimension_semantics = [#tpu.dimension_semantics<parallel>], iteration_bounds = array<i64: 1>, scalar_prefetch = 0 : i64, scratch_operands = 0 : i64, tpu.core_type = #tpu.core_type<tc>, window_params = [{transform_indices = @transform_0, window_bounds = array<i64: 128, 16>}, {pipeline_mode = #tpu.pipeline_mode<synchronous>, transform_indices = @transform_1, window_bounds = array<i64: 16, 128>}, {pipeline_mode = #tpu.pipeline_mode<synchronous>, transform_indices = @transform_2, window_bounds = array<i64: 1, 128>}, {pipeline_mode = #tpu.pipeline_mode<synchronous>, transform_indices = @transform_3, window_bounds = array<i64: 128, 128>}, {pipeline_mode = #tpu.pipeline_mode<synchronous>, transform_indices = @transform_4, window_bounds = array<i64: 1, 128>}, {pipeline_mode = #tpu.pipeline_mode<synchronous>, transform_indices = @transform_5, window_bounds = array<i64: 128, 8>}, {pipeline_mode = #tpu.pipeline_mode<synchronous>, transform_indices = @transform_6, window_bounds = array<i64: 1, 8>}, {transform_indices = @transform_7, window_bounds = array<i64: 128, 8>}]} {
    %c0 = arith.constant 0 : index
    %c0_0 = arith.constant 0 : index
    %0 = vector.load %arg1[%c0, %c0_0] : memref<128x16xf32, #tpu.memory_space<vmem>>, vector<128x16xf32>
    %c0_1 = arith.constant 0 : index
    %c0_2 = arith.constant 0 : index
    %1 = vector.load %arg2[%c0_1, %c0_2] : memref<16x128xf32, #tpu.memory_space<vmem>>, vector<16x128xf32>
    %cst = arith.constant dense<0.000000e+00> : vector<128x128xf32>
    %2 = tpu.matmul %0, %1, %cst {dimension_numbers = #tpu.dot_dimension_numbers<[1], [0], [0], [1], [0, 0, 1, 1], [], []>} : vector<128x16xf32>, vector<16x128xf32>, vector<128x128xf32> -> vector<128x128xf32>
    %c0_3 = arith.constant 0 : index
    %c0_4 = arith.constant 0 : index
    %3 = vector.load %arg3[%c0_3, %c0_4] : memref<1x128xf32, #tpu.memory_space<vmem>>, vector<1x128xf32>
    %4 = vector.broadcast %3 : vector<1x128xf32> to vector<128x128xf32>
    %5 = arith.addf %2, %4 : vector<128x128xf32>
    %cst_5 = arith.constant 0.000000e+00 : f32
    %6 = vector.broadcast %cst_5 : f32 to vector<128x128xf32>
    %7 = arith.maximumf %5, %6 : vector<128x128xf32>
    %c0_6 = arith.constant 0 : index
    %c0_7 = arith.constant 0 : index
    %8 = vector.load %arg4[%c0_6, %c0_7] : memref<128x128xf32, #tpu.memory_space<vmem>>, vector<128x128xf32>
    %cst_8 = arith.constant dense<0.000000e+00> : vector<128x128xf32>
    %9 = tpu.matmul %7, %8, %cst_8 {dimension_numbers = #tpu.dot_dimension_numbers<[1], [0], [0], [1], [0, 0, 1, 1], [], []>} : vector<128x128xf32>, vector<128x128xf32>, vector<128x128xf32> -> vector<128x128xf32>
    %c0_9 = arith.constant 0 : index
    %c0_10 = arith.constant 0 : index
    %10 = vector.load %arg5[%c0_9, %c0_10] : memref<1x128xf32, #tpu.memory_space<vmem>>, vector<1x128xf32>
    %11 = vector.broadcast %10 : vector<1x128xf32> to vector<128x128xf32>
    %12 = arith.addf %9, %11 : vector<128x128xf32>
    %cst_11 = arith.constant 0.000000e+00 : f32
    %13 = vector.broadcast %cst_11 : f32 to vector<128x128xf32>
    %14 = arith.maximumf %12, %13 : vector<128x128xf32>
    %c0_12 = arith.constant 0 : index
    %c0_13 = arith.constant 0 : index
    %15 = vector.load %arg6[%c0_12, %c0_13] : memref<128x8xf32, #tpu.memory_space<vmem>>, vector<128x8xf32>
    %cst_14 = arith.constant dense<0.000000e+00> : vector<128x8xf32>
    %16 = tpu.matmul %14, %15, %cst_14 {dimension_numbers = #tpu.dot_dimension_numbers<[1], [0], [0], [1], [0, 0, 1, 1], [], []>} : vector<128x128xf32>, vector<128x8xf32>, vector<128x8xf32> -> vector<128x8xf32>
    %c0_15 = arith.constant 0 : index
    %c0_16 = arith.constant 0 : index
    %17 = vector.load %arg7[%c0_15, %c0_16] : memref<1x8xf32, #tpu.memory_space<vmem>>, vector<1x8xf32>
    %18 = vector.broadcast %17 : vector<1x8xf32> to vector<128x8xf32>
    %19 = arith.addf %16, %18 : vector<128x8xf32>
    %20 = math.tanh %19 : vector<128x8xf32>
    %cst_17 = arith.constant 2.000000e+00 : f32
    %21 = vector.broadcast %cst_17 : f32 to vector<128x8xf32>
    %22 = arith.mulf %21, %20 : vector<128x8xf32>
    %c0_18 = arith.constant 0 : index
    %c0_19 = arith.constant 0 : index
    %23 = vector.load %arg8[%c0_18, %c0_19] : memref<128x8xf32, #tpu.memory_space<vmem>>, vector<128x8xf32>
    tpu.vector_store %arg8[%c0_18, %c0_19], %22 {strides = array<i32>} : memref<128x8xf32, #tpu.memory_space<vmem>>, vector<128x8xf32>,
    return
  }
  func.func @transform_0(%arg0: i32) -> (i32, i32) {
    %c0_i32 = arith.constant 0 : i32
    %c0_i32_0 = arith.constant 0 : i32
    return %arg0, %c0_i32 : i32, i32
  }
  func.func @transform_1(%arg0: i32) -> (i32, i32) {
    %c0_i32 = arith.constant 0 : i32
    %c0_i32_0 = arith.constant 0 : i32
    %c0_i32_1 = arith.constant 0 : i32
    return %c0_i32, %c0_i32_0 : i32, i32
  }
  func.func @transform_2(%arg0: i32) -> (i32, i32) {
    %c0_i32 = arith.constant 0 : i32
    %c0_i32_0 = arith.constant 0 : i32
    %c0_i32_1 = arith.constant 0 : i32
    return %c0_i32, %c0_i32_0 : i32, i32
  }
  func.func @transform_3(%arg0: i32) -> (i32, i32) {
    %c0_i32 = arith.constant 0 : i32
    %c0_i32_0 = arith.constant 0 : i32
    %c0_i32_1 = arith.constant 0 : i32
    return %c0_i32, %c0_i32_0 : i32, i32
  }
  func.func @transform_4(%arg0: i32) -> (i32, i32) {
    %c0_i32 = arith.constant 0 : i32
    %c0_i32_0 = arith.constant 0 : i32
    %c0_i32_1 = arith.constant 0 : i32
    return %c0_i32, %c0_i32_0 : i32, i32
  }
  func.func @transform_5(%arg0: i32) -> (i32, i32) {
    %c0_i32 = arith.constant 0 : i32
    %c0_i32_0 = arith.constant 0 : i32
    %c0_i32_1 = arith.constant 0 : i32
    return %c0_i32, %c0_i32_0 : i32, i32
  }
  func.func @transform_6(%arg0: i32) -> (i32, i32) {
    %c0_i32 = arith.constant 0 : i32
    %c0_i32_0 = arith.constant 0 : i32
    %c0_i32_1 = arith.constant 0 : i32
    return %c0_i32, %c0_i32_0 : i32, i32
  }
  func.func @transform_7(%arg0: i32) -> (i32, i32) {
    %c0_i32 = arith.constant 0 : i32
    %c0_i32_0 = arith.constant 0 : i32
    return %arg0, %c0_i32 : i32, i32
  }
}

</mosaic_0001>

<llo_original>
// kernel: tpu_custom_call.1
$region0: #{tpu_custom_call.1}
  #allocation0 [shape = 'u32[]', space=smem, size = 0x4, offset = 0x4, fixed_abs, tag = 'smem constant byte address 0x4 - core index']
  #allocation1 [shape = 'u32[72,128]{1,0:T(1,128)}', space=vmem, size = 0x9000, scoped, tag = 'internal scratch']
  %s0 = inlined_call_operand.vmem [shape: f32[128,16], index: 0, kind: input, shape index: {}]
  %s1 = inlined_call_operand.vmem [shape: f32[16,128], index: 1, kind: input, shape index: {}]
  %s2 = inlined_call_operand.vmem [shape: f32[1,128], index: 2, kind: input, shape index: {}]
  %s3 = inlined_call_operand.vmem [shape: f32[128,128], index: 3, kind: input, shape index: {}]
  %s4 = inlined_call_operand.vmem [shape: f32[1,128], index: 4, kind: input, shape index: {}]
  %s5 = inlined_call_operand.vmem [shape: f32[128,8], index: 5, kind: input, shape index: {}]
  %s6 = inlined_call_operand.vmem [shape: f32[1,8], index: 6, kind: input, shape index: {}]
  %s7 = inlined_call_operand.vmem [shape: f32[128,8], index: 7, kind: output, shape index: {}]
  %s8 = sld [smem:[#allocation0]]
  $region38: #{tpu_custom_call.1} parent=0
    _
  %s10 = ssub.s32 1, %s8
  %s11 = scalar_select 0, %s10, %s8
  // Predicated region
  $region2: #{tpu_custom_call.1} parent=0 // pred_check
    _
  $region3: #{tpu_custom_call.1} parent=0 // pred_check_branch
    %13 = sbr.rel (0) target = $region5
  $region4: #{tpu_custom_call.1} parent=0 // pred_region
    _
  $region5: #{tpu_custom_call.1} parent=0 // pred_fallthru
    _
  // Predicated region
  $region6: #{tpu_custom_call.1} parent=0 // pred_check
    _
  $region7: #{tpu_custom_call.1} parent=0 // pred_check_branch
    %15 = sbr.rel (0) target = $region9
  $region8: #{tpu_custom_call.1} parent=0 // pred_region
    _
  $region9: #{tpu_custom_call.1} parent=0 // pred_fallthru
    _
  // Predicated region
  $region10: #{tpu_custom_call.1} parent=0 // pred_check
    _
  $region11: #{tpu_custom_call.1} parent=0 // pred_check_branch
    %17 = sbr.rel (0) target = $region13
  $region12: #{tpu_custom_call.1} parent=0 // pred_region
    _
  $region13: #{tpu_custom_call.1} parent=0 // pred_fallthru
    _
  // Predicated region
  $region14: #{tpu_custom_call.1} parent=0 // pred_check
    _
  $region15: #{tpu_custom_call.1} parent=0 // pred_check_branch
    %19 = sbr.rel (0) target = $region17
  $region16: #{tpu_custom_call.1} parent=0 // pred_region
    _
  $region17: #{tpu_custom_call.1} parent=0 // pred_fallthru
    _
  // Predicated region
  $region18: #{tpu_custom_call.1} parent=0 // pred_check
    _
  $region19: #{tpu_custom_call.1} parent=0 // pred_check_branch
    %21 = sbr.rel (0) target = $region21
  $region20: #{tpu_custom_call.1} parent=0 // pred_region
    _
  $region21: #{tpu_custom_call.1} parent=0 // pred_fallthru
    _
  // Predicated region
  $region22: #{tpu_custom_call.1} parent=0 // pred_check
    _
  $region23: #{tpu_custom_call.1} parent=0 // pred_check_branch
    %23 = sbr.rel (0) target = $region25
  $region24: #{tpu_custom_call.1} parent=0 // pred_region
    _
  $region25: #{tpu_custom_call.1} parent=0 // pred_fallthru
    _
  // Predicated region
  $region26: #{tpu_custom_call.1} parent=0 // pred_check
    _
  $region27: #{tpu_custom_call.1} parent=0 // pred_check_branch
    %25 = sbr.rel (0) target = $region29
  $region28: #{tpu_custom_call.1} parent=0 // pred_region
    _
  $region29: #{tpu_custom_call.1} parent=0 // pred_fallthru
    _
  %v26 = vld [vmem:[%s0] sm:$0xff]
  %v27 = vld [vmem:[%s0 + $0x8] sm:$0xff]
  %v28 = vld [vmem:[%s0 + $0x10] sm:$0xff]
  %v29 = vld [vmem:[%s0 + $0x18] sm:$0xff]
  %v30 = vld [vmem:[%s0 + $0x20] sm:$0xff]
  %v31 = vld [vmem:[%s0 + $0x28] sm:$0xff]
  %v32 = vld [vmem:[%s0 + $0x30] sm:$0xff]
  %v33 = vld [vmem:[%s0 + $0x38] sm:$0xff]
  %v34 = vld [vmem:[%s0 + $0x40] sm:$0xff]
  %v35 = vld [vmem:[%s0 + $0x48] sm:$0xff]
  %v36 = vld [vmem:[%s0 + $0x50] sm:$0xff]
  %v37 = vld [vmem:[%s0 + $0x58] sm:$0xff]
  %v38 = vld [vmem:[%s0 + $0x60] sm:$0xff]
  %v39 = vld [vmem:[%s0 + $0x68] sm:$0xff]
  %v40 = vld [vmem:[%s0 + $0x70] sm:$0xff]
  %v41 = vld [vmem:[%s0 + $0x78] sm:$0xff]
  %v42 = vld [vmem:[%s1] sm:$0xff]
  %v43 = vld [vmem:[%s1 + $0x8] sm:$0xff]
  %v44 = vld [vmem:[%s2] sm:$0x1]
  %v46 = vperm.slane %v44, 0
  %vm48 = vcmask 130048
  %v50 = vsel %vm48, %v26, 0
  %v53 = vsel %vm48, %v27, 0
  %v56 = vsel %vm48, %v28, 0
  %v59 = vsel %vm48, %v29, 0
  %v62 = vsel %vm48, %v30, 0
  %v65 = vsel %vm48, %v31, 0
  %v68 = vsel %vm48, %v32, 0
  %v71 = vsel %vm48, %v33, 0
  %v74 = vsel %vm48, %v34, 0
  %v77 = vsel %vm48, %v35, 0
  %v80 = vsel %vm48, %v36, 0
  %v83 = vsel %vm48, %v37, 0
  %v86 = vsel %vm48, %v38, 0
  %v89 = vsel %vm48, %v39, 0
  %v92 = vsel %vm48, %v40, 0
  %v95 = vsel %vm48, %v41, 0
  %97 = vmatpush.msra.mxu0 0.0
  %98 = vmatpush.msra.mxu0 0.0
  %99 = vmatpush.msra.mxu0 0.0
  %100 = vmatpush.msra.mxu0 0.0
  %101 = vmatpush.msra.mxu0 0.0
  %102 = vmatpush.msra.mxu0 0.0
  %103 = vmatpush.msra.mxu0 0.0
  %104 = vmatpush.msra.mxu0 0.0
  %105 = vmatpush.msra.mxu0 0.0
  %106 = vmatpush.msra.mxu0 0.0
  %107 = vmatpush.msra.mxu0 0.0
  %108 = vmatpush.msra.mxu0 0.0
  %109 = vmatpush.msra.mxu0 0.0
  %110 = vmatpush.msra.mxu0 0.0
  %111 = vmatpush.msra.mxu0 %v43
  %112 = vmatpush.msra.mxu0 %v42
  %113 = vmatmul.f32.gmra.mxu0 %v50
  %v114 = vpop.f32.mrf.mxu0
  %v115 = vadd.f32 %v46, %v114
  %116 = vmatmul.f32.gmra.mxu0 %v53
  %v117 = vpop.f32.mrf.mxu0
  %v118 = vadd.f32 %v46, %v117
  %119 = vmatmul.f32.gmra.mxu0 %v56
  %v120 = vpop.f32.mrf.mxu0
  %v121 = vadd.f32 %v46, %v120
  %122 = vmatmul.f32.gmra.mxu0 %v59
  %v123 = vpop.f32.mrf.mxu0
  %v124 = vadd.f32 %v46, %v123
  %125 = vmatmul.f32.gmra.mxu0 %v62
  %v126 = vpop.f32.mrf.mxu0
  %v127 = vadd.f32 %v46, %v126
  %128 = vmatmul.f32.gmra.mxu0 %v65
  %v129 = vpop.f32.mrf.mxu0
  %v130 = vadd.f32 %v46, %v129
  %131 = vmatmul.f32.gmra.mxu0 %v68
  %v132 = vpop.f32.mrf.mxu0
  %v133 = vadd.f32 %v46, %v132
  %134 = vmatmul.f32.gmra.mxu0 %v71
  %v135 = vpop.f32.mrf.mxu0
  %v136 = vadd.f32 %v46, %v135
  %137 = vmatmul.f32.gmra.mxu0 %v74
  %v138 = vpop.f32.mrf.mxu0
  %v139 = vadd.f32 %v46, %v138
  %140 = vmatmul.f32.gmra.mxu0 %v77
  %v141 = vpop.f32.mrf.mxu0
  %v142 = vadd.f32 %v46, %v141
  %143 = vmatmul.f32.gmra.mxu0 %v80
  %v144 = vpop.f32.mrf.mxu0
  %v145 = vadd.f32 %v46, %v144
  %146 = vmatmul.f32.gmra.mxu0 %v83
  %v147 = vpop.f32.mrf.mxu0
  %v148 = vadd.f32 %v46, %v147
  %149 = vmatmul.f32.gmra.mxu0 %v86
  %v150 = vpop.f32.mrf.mxu0
  %v151 = vadd.f32 %v46, %v150
  %152 = vmatmul.f32.gmra.mxu0 %v89
  %v153 = vpop.f32.mrf.mxu0
  %v154 = vadd.f32 %v46, %v153
  %155 = vmatmul.f32.gmra.mxu0 %v92
  %v156 = vpop.f32.mrf.mxu0
  %v157 = vadd.f32 %v46, %v156
  %158 = vmatmul.f32.gmra.mxu0 %v95
  %v159 = vpop.f32.mrf.mxu0
  %v160 = vadd.f32 %v46, %v159
  %161 = vdwg.mxu0
  %v162 = vmax.f32 %v115, 0.0
  %v163 = vmax.f32 %v118, 0.0
  %v164 = vmax.f32 %v121, 0.0
  %v165 = vmax.f32 %v124, 0.0
  %v166 = vmax.f32 %v127, 0.0
  %v167 = vmax.f32 %v130, 0.0
  %v168 = vmax.f32 %v133, 0.0
  %v169 = vmax.f32 %v136, 0.0
  %v170 = vmax.f32 %v139, 0.0
  %v171 = vmax.f32 %v142, 0.0
  %v172 = vmax.f32 %v145, 0.0
  %v173 = vmax.f32 %v148, 0.0
  %v174 = vmax.f32 %v151, 0.0
  %v175 = vmax.f32 %v154, 0.0
  %v176 = vmax.f32 %v157, 0.0
  %v177 = vmax.f32 %v160, 0.0
  %v178 = vld [vmem:[%s3] sm:$0xff]
  %v179 = vld [vmem:[%s3 + $0x8] sm:$0xff]
  %v180 = vld [vmem:[%s3 + $0x10] sm:$0xff]
  %v181 = vld [vmem:[%s3 + $0x18] sm:$0xff]
  %v182 = vld [vmem:[%s3 + $0x20] sm:$0xff]
  %v183 = vld [vmem:[%s3 + $0x28] sm:$0xff]
  %v184 = vld [vmem:[%s3 + $0x30] sm:$0xff]
  %v185 = vld [vmem:[%s3 + $0x38] sm:$0xff]
  %v186 = vld [vmem:[%s3 + $0x40] sm:$0xff]
  %v187 = vld [vmem:[%s3 + $0x48] sm:$0xff]
  %v188 = vld [vmem:[%s3 + $0x50] sm:$0xff]
  %v189 = vld [vmem:[%s3 + $0x58] sm:$0xff]
  %v190 = vld [vmem:[%s3 + $0x60] sm:$0xff]
  %v191 = vld [vmem:[%s3 + $0x68] sm:$0xff]
  %v192 = vld [vmem:[%s3 + $0x70] sm:$0xff]
  %v193 = vld [vmem:[%s3 + $0x78] sm:$0xff]
  %v194 = vld [vmem:[%s4] sm:$0x1]
  %v196 = vperm.slane %v194, 0
  %198 = vmatpush.msra.mxu0 %v193
  %199 = vmatpush.msra.mxu0 %v192
  %200 = vmatpush.msra.mxu0 %v191
  %201 = vmatpush.msra.mxu0 %v190
  %202 = vmatpush.msra.mxu0 %v189
  %203 = vmatpush.msra.mxu0 %v188
  %204 = vmatpush.msra.mxu0 %v187
  %205 = vmatpush.msra.mxu0 %v186
  %206 = vmatpush.msra.mxu0 %v185
  %207 = vmatpush.msra.mxu0 %v184
  %208 = vmatpush.msra.mxu0 %v183
  %209 = vmatpush.msra.mxu0 %v182
  %210 = vmatpush.msra.mxu0 %v181
  %211 = vmatpush.msra.mxu0 %v180
  %212 = vmatpush.msra.mxu0 %v179
  %213 = vmatpush.msra.mxu0 %v178
  %214 = vmatmul.f32.gmra.mxu0 %v162
  %v215 = vpop.f32.mrf.mxu0
  %v216 = vadd.f32 %v196, %v215
  %217 = vmatmul.f32.gmra.mxu0 %v163
  %v218 = vpop.f32.mrf.mxu0
  %v219 = vadd.f32 %v196, %v218
  %220 = vmatmul.f32.gmra.mxu0 %v164
  %v221 = vpop.f32.mrf.mxu0
  %v222 = vadd.f32 %v196, %v221
  %223 = vmatmul.f32.gmra.mxu0 %v165
  %v224 = vpop.f32.mrf.mxu0
  %v225 = vadd.f32 %v196, %v224
  %226 = vmatmul.f32.gmra.mxu0 %v166
  %v227 = vpop.f32.mrf.mxu0
  %v228 = vadd.f32 %v196, %v227
  %229 = vmatmul.f32.gmra.mxu0 %v167
  %v230 = vpop.f32.mrf.mxu0
  %v231 = vadd.f32 %v196, %v230
  %232 = vmatmul.f32.gmra.mxu0 %v168
  %v233 = vpop.f32.mrf.mxu0
  %v234 = vadd.f32 %v196, %v233
  %235 = vmatmul.f32.gmra.mxu0 %v169
  %v236 = vpop.f32.mrf.mxu0
  %v237 = vadd.f32 %v196, %v236
  %238 = vmatmul.f32.gmra.mxu0 %v170
  %v239 = vpop.f32.mrf.mxu0
  %v240 = vadd.f32 %v196, %v239
  %241 = vmatmul.f32.gmra.mxu0 %v171
  %v242 = vpop.f32.mrf.mxu0
  %v243 = vadd.f32 %v196, %v242
  %244 = vmatmul.f32.gmra.mxu0 %v172
  %v245 = vpop.f32.mrf.mxu0
  %v246 = vadd.f32 %v196, %v245
  %247 = vmatmul.f32.gmra.mxu0 %v173
  %v248 = vpop.f32.mrf.mxu0
  %v249 = vadd.f32 %v196, %v248
  %250 = vmatmul.f32.gmra.mxu0 %v174
  %v251 = vpop.f32.mrf.mxu0
  %v252 = vadd.f32 %v196, %v251
  %253 = vmatmul.f32.gmra.mxu0 %v175
  %v254 = vpop.f32.mrf.mxu0
  %v255 = vadd.f32 %v196, %v254
  %256 = vmatmul.f32.gmra.mxu0 %v176
  %v257 = vpop.f32.mrf.mxu0
  %v258 = vadd.f32 %v196, %v257
  %259 = vmatmul.f32.gmra.mxu0 %v177
  %v260 = vpop.f32.mrf.mxu0
  %v261 = vadd.f32 %v196, %v260
  %262 = vdwg.mxu0
  %v263 = vmax.f32 %v216, 0.0
  %v264 = vmax.f32 %v219, 0.0
  %v265 = vmax.f32 %v222, 0.0
  %v266 = vmax.f32 %v225, 0.0
  %v267 = vmax.f32 %v228, 0.0
  %v268 = vmax.f32 %v231, 0.0
  %v269 = vmax.f32 %v234, 0.0
  %v270 = vmax.f32 %v237, 0.0
  %v271 = vmax.f32 %v240, 0.0
  %v272 = vmax.f32 %v243, 0.0
  %v273 = vmax.f32 %v246, 0.0
  %v274 = vmax.f32 %v249, 0.0
  %v275 = vmax.f32 %v252, 0.0
  %v276 = vmax.f32 %v255, 0.0
  %v277 = vmax.f32 %v258, 0.0
  %v278 = vmax.f32 %v261, 0.0
  %v279 = vld [vmem:[%s5] sm:$0xff]
  %v280 = vld [vmem:[%s5 + $0x8] sm:$0xff]
  %v281 = vld [vmem:[%s5 + $0x10] sm:$0xff]
  %v282 = vld [vmem:[%s5 + $0x18] sm:$0xff]
  %v283 = vld [vmem:[%s5 + $0x20] sm:$0xff]
  %v284 = vld [vmem:[%s5 + $0x28] sm:$0xff]
  %v285 = vld [vmem:[%s5 + $0x30] sm:$0xff]
  %v286 = vld [vmem:[%s5 + $0x38] sm:$0xff]
  %v287 = vld [vmem:[%s5 + $0x40] sm:$0xff]
  %v288 = vld [vmem:[%s5 + $0x48] sm:$0xff]
  %v289 = vld [vmem:[%s5 + $0x50] sm:$0xff]
  %v290 = vld [vmem:[%s5 + $0x58] sm:$0xff]
  %v291 = vld [vmem:[%s5 + $0x60] sm:$0xff]
  %v292 = vld [vmem:[%s5 + $0x68] sm:$0xff]
  %v293 = vld [vmem:[%s5 + $0x70] sm:$0xff]
  %v294 = vld [vmem:[%s5 + $0x78] sm:$0xff]
  %v295 = vld [vmem:[%s6] sm:$0x1]
  %v297 = vperm.slane %v295, 0
  %299 = vmatpush.msra.mxu0 %v294
  %300 = vmatpush.msra.mxu0 %v293
  %301 = vmatpush.msra.mxu0 %v292
  %302 = vmatpush.msra.mxu0 %v291
  %303 = vmatpush.msra.mxu0 %v290
  %304 = vmatpush.msra.mxu0 %v289
  %305 = vmatpush.msra.mxu0 %v288
  %306 = vmatpush.msra.mxu0 %v287
  %307 = vmatpush.msra.mxu0 %v286
  %308 = vmatpush.msra.mxu0 %v285
  %309 = vmatpush.msra.mxu0 %v284
  %310 = vmatpush.msra.mxu0 %v283
  %311 = vmatpush.msra.mxu0 %v282
  %312 = vmatpush.msra.mxu0 %v281
  %313 = vmatpush.msra.mxu0 %v280
  %314 = vmatpush.msra.mxu0 %v279
  %315 = vmatmul.f32.gmra.mxu0 %v263
  %v316 = vpop.f32.mrf.mxu0
  %v317 = vadd.f32 %v297, %v316
  %318 = vmatmul.f32.gmra.mxu0 %v264
  %v319 = vpop.f32.mrf.mxu0
  %v320 = vadd.f32 %v297, %v319
  %321 = vmatmul.f32.gmra.mxu0 %v265
  %v322 = vpop.f32.mrf.mxu0
  %v323 = vadd.f32 %v297, %v322
  %324 = vmatmul.f32.gmra.mxu0 %v266
  %v325 = vpop.f32.mrf.mxu0
  %v326 = vadd.f32 %v297, %v325
  %327 = vmatmul.f32.gmra.mxu0 %v267
  %v328 = vpop.f32.mrf.mxu0
  %v329 = vadd.f32 %v297, %v328
  %330 = vmatmul.f32.gmra.mxu0 %v268
  %v331 = vpop.f32.mrf.mxu0
  %v332 = vadd.f32 %v297, %v331
  %333 = vmatmul.f32.gmra.mxu0 %v269
  %v334 = vpop.f32.mrf.mxu0
  %v335 = vadd.f32 %v297, %v334
  %336 = vmatmul.f32.gmra.mxu0 %v270
  %v337 = vpop.f32.mrf.mxu0
  %v338 = vadd.f32 %v297, %v337
  %339 = vmatmul.f32.gmra.mxu0 %v271
  %v340 = vpop.f32.mrf.mxu0
  %v341 = vadd.f32 %v297, %v340
  %342 = vmatmul.f32.gmra.mxu0 %v272
  %v343 = vpop.f32.mrf.mxu0
  %v344 = vadd.f32 %v297, %v343
  %345 = vmatmul.f32.gmra.mxu0 %v273
  %v346 = vpop.f32.mrf.mxu0
  %v347 = vadd.f32 %v297, %v346
  %348 = vmatmul.f32.gmra.mxu0 %v274
  %v349 = vpop.f32.mrf.mxu0
  %v350 = vadd.f32 %v297, %v349
  %351 = vmatmul.f32.gmra.mxu0 %v275
  %v352 = vpop.f32.mrf.mxu0
  %v353 = vadd.f32 %v297, %v352
  %354 = vmatmul.f32.gmra.mxu0 %v276
  %v355 = vpop.f32.mrf.mxu0
  %v356 = vadd.f32 %v297, %v355
  %357 = vmatmul.f32.gmra.mxu0 %v277
  %v358 = vpop.f32.mrf.mxu0
  %v359 = vadd.f32 %v297, %v358
  %360 = vmatmul.f32.gmra.mxu0 %v278
  %v361 = vpop.f32.mrf.mxu0
  %v362 = vadd.f32 %v297, %v361
  %363 = vdwg.mxu0
  %v364 = vtanh.pop %v317
  %v365 = vtanh.pop %v320
  %v366 = vtanh.pop %v323
  %v367 = vtanh.pop %v326
  %v368 = vtanh.pop %v329
  %v369 = vtanh.pop %v332
  %v370 = vtanh.pop %v335
  %v371 = vtanh.pop %v338
  %v372 = vtanh.pop %v341
  %v373 = vtanh.pop %v344
  %v374 = vtanh.pop %v347
  %v375 = vtanh.pop %v350
  %v376 = vtanh.pop %v353
  %v377 = vtanh.pop %v356
  %v378 = vtanh.pop %v359
  %v379 = vtanh.pop %v362
  %v380 = vmul.f32 %v364, 2.0
  %v381 = vmul.f32 %v365, 2.0
  %v382 = vmul.f32 %v366, 2.0
  %v383 = vmul.f32 %v367, 2.0
  %v384 = vmul.f32 %v368, 2.0
  %v385 = vmul.f32 %v369, 2.0
  %v386 = vmul.f32 %v370, 2.0
  %v387 = vmul.f32 %v371, 2.0
  %v388 = vmul.f32 %v372, 2.0
  %v389 = vmul.f32 %v373, 2.0
  %v390 = vmul.f32 %v374, 2.0
  %v391 = vmul.f32 %v375, 2.0
  %v392 = vmul.f32 %v376, 2.0
  %v393 = vmul.f32 %v377, 2.0
  %v394 = vmul.f32 %v378, 2.0
  %v395 = vmul.f32 %v379, 2.0
  %vm396 = vcmask 64512
  %397 = vst.msk [vmem:[%s7] sm:$0xff] %vm396, %v380
  %398 = vst.msk [vmem:[%s7 + $0x8] sm:$0xff] %vm396, %v381
  %399 = vst.msk [vmem:[%s7 + $0x10] sm:$0xff] %vm396, %v382
  %400 = vst.msk [vmem:[%s7 + $0x18] sm:$0xff] %vm396, %v383
  %401 = vst.msk [vmem:[%s7 + $0x20] sm:$0xff] %vm396, %v384
  %402 = vst.msk [vmem:[%s7 + $0x28] sm:$0xff] %vm396, %v385
  %403 = vst.msk [vmem:[%s7 + $0x30] sm:$0xff] %vm396, %v386
  %404 = vst.msk [vmem:[%s7 + $0x38] sm:$0xff] %vm396, %v387
  %405 = vst.msk [vmem:[%s7 + $0x40] sm:$0xff] %vm396, %v388
  %406 = vst.msk [vmem:[%s7 + $0x48] sm:$0xff] %vm396, %v389
  %407 = vst.msk [vmem:[%s7 + $0x50] sm:$0xff] %vm396, %v390
  %408 = vst.msk [vmem:[%s7 + $0x58] sm:$0xff] %vm396, %v391
  %409 = vst.msk [vmem:[%s7 + $0x60] sm:$0xff] %vm396, %v392
  %410 = vst.msk [vmem:[%s7 + $0x68] sm:$0xff] %vm396, %v393
  %411 = vst.msk [vmem:[%s7 + $0x70] sm:$0xff] %vm396, %v394
  %412 = vst.msk [vmem:[%s7 + $0x78] sm:$0xff] %vm396, %v395
  // Predicated region
  $region30: #{tpu_custom_call.1} parent=0 // pred_check
    _
  $region31: #{tpu_custom_call.1} parent=0 // pred_check_branch
    %414 = sbr.rel (0) target = $region33
  $region32: #{tpu_custom_call.1} parent=0 // pred_region
    _
  $region33: #{tpu_custom_call.1} parent=0 // pred_fallthru
    _
  // Predicated region
  $region34: #{tpu_custom_call.1} parent=0 // pred_check
    _
  $region35: #{tpu_custom_call.1} parent=0 // pred_check_branch
    %416 = sbr.rel (0) target = $region37
  $region36: #{tpu_custom_call.1} parent=0 // pred_region
    _
  $region37: #{tpu_custom_call.1} parent=0 // pred_fallthru
    _

</llo_original>
